<compile_context>
chip_gen: v5e
topology: v5e:2x2
jax: 0.10.0
libtpu: 0.0.40
codegen_flags: <defaults>
</compile_context>

<pallas_src>
import jax
import jax.numpy as jnp
from jax.experimental import pallas as pl
from jax.experimental.pallas import tpu as pltpu

# ---- model sizes -----------------------------------------------------------
NUM_INPUTS = 32
NUM_INTERNEURONS = 64
NUM_MSNS = 16

BATCH = 16
THRESHOLD = 1.0     # snn.Leaky(threshold=1.0); beta=0.9 irrelevant (mem starts at 0)

H13 = NUM_INTERNEURONS + NUM_MSNS            # 80: fused fc1|fc3 output width


# ---- kernel ----------------------------------------------------------------
def nacc_kernel(x_ref, w13_ref, b13_ref, w2n_ref, b2n_ref,
                spk1_ref, spk2_ref, spk_out_ref):
    x = x_ref[...]                                                    # (T, 32)

    # Fused fc1|fc3: one MXU matmul. The fc1 columns of b13 already carry
    # -THRESHOLD, the fc3 columns do not.
    h13 = jnp.dot(x, w13_ref[...],
                  preferred_element_type=jnp.float32) + b13_ref[...]  # (T, 80)
    h1t = h13[:, :NUM_INTERNEURONS]       # = h1 - threshold          # (T, 64)
    h3 = h13[:, NUM_INTERNEURONS:]        # = h3 (no fold)            # (T, 16)

    spk1 = (h1t > 0.0).astype(jnp.float32)                            # (T, 64)
    spk1_ref[...] = spk1                                              # direct store

    # h2t = h2 - threshold; the -1.0 of fc2 and the -THRESHOLD are both folded
    # into the packed w2n / b2n.
    h2t = jnp.dot(spk1, w2n_ref[...],
                  preferred_element_type=jnp.float32) + b2n_ref[...]  # (T, 16)

    spk2_ref[...] = (h2t > 0.0).astype(jnp.float32)                   # direct store
    spk_out_ref[...] = ((h2t + h3) > 0.0).astype(jnp.float32)         # direct store


# ---- parameter packing -----------------------------------------------------
def pack_params(params):
    """One-time packing of the torch-style params into fused kernel operands.

    * W13 = [w1 | w3]                     (32, 80)
    * b13 = [b1 - THRESHOLD | b3]         (1, 80)   (fold ONLY into the fc1 cols)
    * w2_neg = -w2, b2_neg = -b2 - THRESHOLD
    """
    w1, b1, w2, b2, w3, b3 = params
    w13 = jnp.concatenate([w1, w3], axis=1)                    # (32, 80)
    b13 = jnp.concatenate([b1 - THRESHOLD, b3], axis=1)        # (1, 80)
    w2_neg = -w2                                               # (64, 16)
    b2_neg = -b2 - THRESHOLD                                   # (1, 16)
    return (w13, b13, w2_neg, b2_neg)


# ---- wrapper ---------------------------------------------------------------
def _pick_row_tile(n):
    """Pick a row tile: tiny stacks run in one grid step (no per-step overhead);
    larger stacks get >=2 'parallel' steps so both v7x TensorCores are fed."""
    if n <= 32:
        return n
    for cand in (256, 128, 64, 32, 16, 8):
        if n % cand == 0 and n // cand >= 2:
            return cand
    return n


def nacc_forward(x, packed_params, *, row_tile=None):
    """x: (N, 32) row stack (batch, or timesteps*batch flattened). Returns
    (spk1 (N,64), spk2 (N,16), spk_out (N,16)) from a single pallas_call."""
    w13, b13, w2n, b2n = packed_params
    n = x.shape[0]

    if row_tile is None:
        row_tile = _pick_row_tile(n)
    assert n % row_tile == 0 and (row_tile % 8 == 0 or row_tile == n)
    grid = (n // row_tile,)

    vmem = pltpu.MemorySpace.VMEM
    in_specs = [
        # activations: one row tile per grid step
        pl.BlockSpec((row_tile, NUM_INPUTS), lambda i: (i, 0), memory_space=vmem),
        # weights / biases: batch-invariant index_map -> DMA'd once, stay
        # VMEM-resident across all grid steps
        pl.BlockSpec((NUM_INPUTS, H13), lambda i: (0, 0), memory_space=vmem),
        pl.BlockSpec((1, H13), lambda i: (0, 0), memory_space=vmem),
        pl.BlockSpec((NUM_INTERNEURONS, NUM_MSNS), lambda i: (0, 0), memory_space=vmem),
        pl.BlockSpec((1, NUM_MSNS), lambda i: (0, 0), memory_space=vmem),
    ]
    out_shape = (
        jax.ShapeDtypeStruct((n, NUM_INTERNEURONS), jnp.float32),
        jax.ShapeDtypeStruct((n, NUM_MSNS), jnp.float32),
        jax.ShapeDtypeStruct((n, NUM_MSNS), jnp.float32),
    )
    out_specs = (
        pl.BlockSpec((row_tile, NUM_INTERNEURONS), lambda i: (i, 0), memory_space=vmem),
        pl.BlockSpec((row_tile, NUM_MSNS), lambda i: (i, 0), memory_space=vmem),
        pl.BlockSpec((row_tile, NUM_MSNS), lambda i: (i, 0), memory_space=vmem),
    )

    # Tiny-kernel hint for the XLA scheduler.
    flops = (2 * n * NUM_INPUTS * H13
             + 2 * n * NUM_INTERNEURONS * NUM_MSNS
             + 6 * n * NUM_MSNS)
    bytes_accessed = 4 * int(x.size + w13.size + b13.size + w2n.size + b2n.size
                             + n * (NUM_INTERNEURONS + 2 * NUM_MSNS))

    return pl.pallas_call(
        nacc_kernel,
        grid=grid,
        in_specs=in_specs,
        out_specs=out_specs,
        out_shape=out_shape,
        compiler_params=pltpu.CompilerParams(dimension_semantics=("parallel",)),
        cost_estimate=pl.CostEstimate(flops=flops, transcendentals=0,
                                      bytes_accessed=bytes_accessed),
    )(x, w13, b13, w2n, b2n)


# ---- init & verification ---------------------------------------------------
def init_params(key):
    """Deterministic init mimicking nn.Linear default (U(-1/sqrt(fan_in), +)),
    weights stored already transposed: (in_features, out_features)."""
    ks = jax.random.split(key, 6)

    def linear(kw, kb, fan_in, fan_out, scale=1.0):
        bound = scale / jnp.sqrt(jnp.float32(fan_in))
        w = jax.random.uniform(kw, (fan_in, fan_out), jnp.float32, -bound, bound)
        b = jax.random.uniform(kb, (1, fan_out), jnp.float32, -bound, bound)
        return w, b

    # scale up a bit so some membrane potentials actually cross threshold=1.0
    w1, b1 = linear(ks[0], ks[1], NUM_INPUTS, NUM_INTERNEURONS, scale=4.0)
    w2, b2 = linear(ks[2], ks[3], NUM_INTERNEURONS, NUM_MSNS, scale=4.0)
    w3, b3 = linear(ks[4], ks[5], NUM_INPUTS, NUM_MSNS, scale=4.0)
    return (w1, b1, w2, b2, w3, b3)


def verify(x, params, spk1, spk2, spk_out):
    """Check against the torch-style reference. Exact match is required except
    for float-rounding ties exactly at the threshold (the bias fold can move a
    membrane value by ~1 ulp across the boundary)."""
    w1, b1, w2, b2, w3, b3 = params

    def check(got, mem, name):
        want = (mem > THRESHOLD).astype(jnp.float32)
        mismatch = jnp.not_equal(got, want)
        tie = jnp.abs(mem - THRESHOLD) < 1e-5
        ok = bool(jnp.all(jnp.logical_or(jnp.logical_not(mismatch), tie)))
        assert ok, f"{name} mismatch away from the threshold"

    h1 = x @ w1 + b1
    check(spk1, h1, "spk1")
    # use the kernel's spk1 downstream so later checks stay consistent even if a
    # threshold tie flipped a bit in spk1
    h2 = -1.0 * (spk1 @ w2 + b2)
    check(spk2, h2, "spk2")
    h3 = x @ w3 + b3
    check(spk_out, h2 + h3, "spk_out")


if __name__ == "__main__":
    key = jax.random.PRNGKey(0)
    k_params, k_x, k_stack = jax.random.split(key, 3)

    params = init_params(k_params)
    packed = pack_params(params)

    # Small batch consistent with the module: single grid step.
    x = jax.random.normal(k_x, (BATCH, NUM_INPUTS), jnp.float32)
    spk1, spk2, spk_out = nacc_forward(x, packed)
    jax.block_until_ready((spk1, spk2, spk_out))
    assert spk1.shape == (BATCH, NUM_INTERNEURONS)
    assert spk2.shape == (BATCH, NUM_MSNS)
    assert spk_out.shape == (BATCH, NUM_MSNS)
    verify(x, params, spk1, spk2, spk_out)

    # Amortized path: a stack of rows (e.g. timesteps x batch flattened) in ONE
    # pallas_call -> grid of 2 'parallel' steps, weights DMA'd once and resident.
    xs = jax.random.normal(k_stack, (4 * BATCH, NUM_INPUTS), jnp.float32)
    s1, s2, so = nacc_forward(xs, packed)
    jax.block_until_ready((s1, s2, so))
    verify(xs, params, s1, s2, so)

    print("KERNEL_OK")
</pallas_src>

<mosaic_0001>
module attributes {stable_mosaic.version = 11 : i64} {
  func.func @nacc_kernel(%arg0: i32, %arg1: memref<16x32xf32, #tpu.memory_space<vmem>>, %arg2: memref<32x80xf32, #tpu.memory_space<vmem>>, %arg3: memref<1x80xf32, #tpu.memory_space<vmem>>, %arg4: memref<64x16xf32, #tpu.memory_space<vmem>>, %arg5: memref<1x16xf32, #tpu.memory_space<vmem>>, %arg6: memref<16x64xf32, #tpu.memory_space<vmem>>, %arg7: memref<16x16xf32, #tpu.memory_space<vmem>>, %arg8: memref<16x16xf32, #tpu.memory_space<vmem>>) attributes {dimension_semantics = [#tpu.dimension_semantics<parallel>], iteration_bounds = array<i64: 1>, scalar_prefetch = 0 : i64, scratch_operands = 0 : i64, tpu.core_type = #tpu.core_type<tc>, window_params = [{transform_indices = @transform_0, window_bounds = array<i64: 16, 32>}, {pipeline_mode = #tpu.pipeline_mode<synchronous>, transform_indices = @transform_1, window_bounds = array<i64: 32, 80>}, {pipeline_mode = #tpu.pipeline_mode<synchronous>, transform_indices = @transform_2, window_bounds = array<i64: 1, 80>}, {pipeline_mode = #tpu.pipeline_mode<synchronous>, transform_indices = @transform_3, window_bounds = array<i64: 64, 16>}, {pipeline_mode = #tpu.pipeline_mode<synchronous>, transform_indices = @transform_4, window_bounds = array<i64: 1, 16>}, {transform_indices = @transform_5, window_bounds = array<i64: 16, 64>}, {transform_indices = @transform_6, window_bounds = array<i64: 16, 16>}, {transform_indices = @transform_7, window_bounds = array<i64: 16, 16>}]} {
    %c0 = arith.constant 0 : index
    %c0_0 = arith.constant 0 : index
    %0 = vector.load %arg1[%c0, %c0_0] : memref<16x32xf32, #tpu.memory_space<vmem>>, vector<16x32xf32>
    %c0_1 = arith.constant 0 : index
    %c0_2 = arith.constant 0 : index
    %1 = vector.load %arg2[%c0_1, %c0_2] : memref<32x80xf32, #tpu.memory_space<vmem>>, vector<32x80xf32>
    %cst = arith.constant dense<0.000000e+00> : vector<16x80xf32>
    %2 = tpu.matmul %0, %1, %cst {dimension_numbers = #tpu.dot_dimension_numbers<[1], [0], [0], [1], [0, 0, 1, 1], [], []>} : vector<16x32xf32>, vector<32x80xf32>, vector<16x80xf32> -> vector<16x80xf32>
    %c0_3 = arith.constant 0 : index
    %c0_4 = arith.constant 0 : index
    %3 = vector.load %arg3[%c0_3, %c0_4] : memref<1x80xf32, #tpu.memory_space<vmem>>, vector<1x80xf32>
    %4 = vector.broadcast %3 : vector<1x80xf32> to vector<16x80xf32>
    %5 = arith.addf %2, %4 : vector<16x80xf32>
    %6 = vector.extract_strided_slice %5 {offsets = [0, 0], sizes = [16, 64], strides = [1, 1]} : vector<16x80xf32> to vector<16x64xf32>
    %7 = vector.extract_strided_slice %5 {offsets = [0, 64], sizes = [16, 16], strides = [1, 1]} : vector<16x80xf32> to vector<16x16xf32>
    %cst_5 = arith.constant 0.000000e+00 : f32
    %8 = vector.broadcast %cst_5 : f32 to vector<16x64xf32>
    %9 = arith.cmpf ogt, %6, %8 : vector<16x64xf32>
    %10 = arith.extui %9 : vector<16x64xi1> to vector<16x64xi32>
    %11 = arith.sitofp %10 : vector<16x64xi32> to vector<16x64xf32>
    %c0_6 = arith.constant 0 : index
    %c0_7 = arith.constant 0 : index
    %12 = vector.load %arg6[%c0_6, %c0_7] : memref<16x64xf32, #tpu.memory_space<vmem>>, vector<16x64xf32>
    tpu.vector_store %arg6[%c0_6, %c0_7], %11 {strides = array<i32>} : memref<16x64xf32, #tpu.memory_space<vmem>>, vector<16x64xf32>,
    %c0_8 = arith.constant 0 : index
    %c0_9 = arith.constant 0 : index
    %13 = vector.load %arg4[%c0_8, %c0_9] : memref<64x16xf32, #tpu.memory_space<vmem>>, vector<64x16xf32>
    %cst_10 = arith.constant dense<0.000000e+00> : vector<16x16xf32>
    %14 = tpu.matmul %11, %13, %cst_10 {dimension_numbers = #tpu.dot_dimension_numbers<[1], [0], [0], [1], [0, 0, 1, 1], [], []>} : vector<16x64xf32>, vector<64x16xf32>, vector<16x16xf32> -> vector<16x16xf32>
    %c0_11 = arith.constant 0 : index
    %c0_12 = arith.constant 0 : index
    %15 = vector.load %arg5[%c0_11, %c0_12] : memref<1x16xf32, #tpu.memory_space<vmem>>, vector<1x16xf32>
    %16 = vector.broadcast %15 : vector<1x16xf32> to vector<16x16xf32>
    %17 = arith.addf %14, %16 : vector<16x16xf32>
    %cst_13 = arith.constant 0.000000e+00 : f32
    %18 = vector.broadcast %cst_13 : f32 to vector<16x16xf32>
    %19 = arith.cmpf ogt, %17, %18 : vector<16x16xf32>
    %20 = arith.extui %19 : vector<16x16xi1> to vector<16x16xi32>
    %21 = arith.sitofp %20 : vector<16x16xi32> to vector<16x16xf32>
    %c0_14 = arith.constant 0 : index
    %c0_15 = arith.constant 0 : index
    %22 = vector.load %arg7[%c0_14, %c0_15] : memref<16x16xf32, #tpu.memory_space<vmem>>, vector<16x16xf32>
    tpu.vector_store %arg7[%c0_14, %c0_15], %21 {strides = array<i32>} : memref<16x16xf32, #tpu.memory_space<vmem>>, vector<16x16xf32>,
    %23 = arith.addf %17, %7 : vector<16x16xf32>
    %cst_16 = arith.constant 0.000000e+00 : f32
    %24 = vector.broadcast %cst_16 : f32 to vector<16x16xf32>
    %25 = arith.cmpf ogt, %23, %24 : vector<16x16xf32>
    %26 = arith.extui %25 : vector<16x16xi1> to vector<16x16xi32>
    %27 = arith.sitofp %26 : vector<16x16xi32> to vector<16x16xf32>
    %c0_17 = arith.constant 0 : index
    %c0_18 = arith.constant 0 : index
    %28 = vector.load %arg8[%c0_17, %c0_18] : memref<16x16xf32, #tpu.memory_space<vmem>>, vector<16x16xf32>
    tpu.vector_store %arg8[%c0_17, %c0_18], %27 {strides = array<i32>} : memref<16x16xf32, #tpu.memory_space<vmem>>, vector<16x16xf32>,
    return
  }
  func.func @transform_0(%arg0: i32) -> (i32, i32) {
    %c0_i32 = arith.constant 0 : i32
    %c0_i32_0 = arith.constant 0 : i32
    return %arg0, %c0_i32 : i32, i32
  }
  func.func @transform_1(%arg0: i32) -> (i32, i32) {
    %c0_i32 = arith.constant 0 : i32
    %c0_i32_0 = arith.constant 0 : i32
    %c0_i32_1 = arith.constant 0 : i32
    return %c0_i32, %c0_i32_0 : i32, i32
  }
  func.func @transform_2(%arg0: i32) -> (i32, i32) {
    %c0_i32 = arith.constant 0 : i32
    %c0_i32_0 = arith.constant 0 : i32
    %c0_i32_1 = arith.constant 0 : i32
    return %c0_i32, %c0_i32_0 : i32, i32
  }
  func.func @transform_3(%arg0: i32) -> (i32, i32) {
    %c0_i32 = arith.constant 0 : i32
    %c0_i32_0 = arith.constant 0 : i32
    %c0_i32_1 = arith.constant 0 : i32
    return %c0_i32, %c0_i32_0 : i32, i32
  }
  func.func @transform_4(%arg0: i32) -> (i32, i32) {
    %c0_i32 = arith.constant 0 : i32
    %c0_i32_0 = arith.constant 0 : i32
    %c0_i32_1 = arith.constant 0 : i32
    return %c0_i32, %c0_i32_0 : i32, i32
  }
  func.func @transform_5(%arg0: i32) -> (i32, i32) {
    %c0_i32 = arith.constant 0 : i32
    %c0_i32_0 = arith.constant 0 : i32
    return %arg0, %c0_i32 : i32, i32
  }
  func.func @transform_6(%arg0: i32) -> (i32, i32) {
    %c0_i32 = arith.constant 0 : i32
    %c0_i32_0 = arith.constant 0 : i32
    return %arg0, %c0_i32 : i32, i32
  }
  func.func @transform_7(%arg0: i32) -> (i32, i32) {
    %c0_i32 = arith.constant 0 : i32
    %c0_i32_0 = arith.constant 0 : i32
    return %arg0, %c0_i32 : i32, i32
  }
}

</mosaic_0001>

<llo_original>
// kernel: tpu_custom_call.1
$region0: #{tpu_custom_call.1}
  #allocation0 [shape = 'u32[]', space=smem, size = 0x4, offset = 0x4, fixed_abs, tag = 'smem constant byte address 0x4 - core index']
  #allocation1 [shape = 'u32[72,128]{1,0:T(1,128)}', space=vmem, size = 0x9000, scoped, tag = 'internal scratch']
  %s0 = inlined_call_operand.vmem [shape: f32[16,32], index: 0, kind: input, shape index: {}]
  %s1 = inlined_call_operand.vmem [shape: f32[32,80], index: 1, kind: input, shape index: {}]
  %s2 = inlined_call_operand.vmem [shape: f32[1,80], index: 2, kind: input, shape index: {}]
  %s3 = inlined_call_operand.vmem [shape: f32[64,16], index: 3, kind: input, shape index: {}]
  %s4 = inlined_call_operand.vmem [shape: f32[1,16], index: 4, kind: input, shape index: {}]
  %s5 = inlined_call_operand.hbm [shape: f32[16,64], index: 5, kind: output, shape index: {0}]
  %s6 = inlined_call_operand.hbm [shape: f32[16,16], index: 6, kind: output, shape index: {1}]
  %s7 = inlined_call_operand.hbm [shape: f32[16,16], index: 7, kind: output, shape index: {2}]
  %8 = xla_tuple %s5, %s6, %s7
  %s9 = sld [smem:[#allocation0]]
  $region46: #{tpu_custom_call.1} parent=0
    _
  %s11 = ssub.s32 1, %s9
  %s12 = scalar_select 0, %s11, %s9
  $region1: #{tpu_custom_call.1} parent=0
    #allocation2 [shape = 'u8[8192]{0}', space=vmem, size = 0x2000, scoped, tag = 'output window, operand 0, single buffered']
    #allocation3 [shape = 's32[1]{0}', space=sflag, size = 0x4, scoped, tag = 'scoped memory for tpu_custom_call.1']
    #allocation4 [shape = 'u8[8192]{0}', space=vmem, size = 0x2000, scoped, tag = 'output window, operand 1, single buffered']
    #allocation5 [shape = 's32[1]{0}', space=sflag, size = 0x4, scoped, tag = 'scoped memory for tpu_custom_call.1']
    #allocation6 [shape = 'u8[8192]{0}', space=vmem, size = 0x2000, scoped, tag = 'output window, operand 2, single buffered']
    %13 = vsyncpa [#allocation3], 0
    %14 = vsyncpa [#allocation5], 0
    // Predicated region
    $region2: #{tpu_custom_call.1} parent=1 // pred_check
      _
    $region3: #{tpu_custom_call.1} parent=1 // pred_check_branch
      %16 = sbr.rel (0) target = $region5
    $region4: #{tpu_custom_call.1} parent=1 // pred_region
      _
    $region5: #{tpu_custom_call.1} parent=1 // pred_fallthru
      _
    // Predicated region
    $region6: #{tpu_custom_call.1} parent=1 // pred_check
      _
    $region7: #{tpu_custom_call.1} parent=1 // pred_check_branch
      %18 = sbr.rel (0) target = $region9
    $region8: #{tpu_custom_call.1} parent=1 // pred_region
      _
    $region9: #{tpu_custom_call.1} parent=1 // pred_fallthru
      _
    // Predicated region
    $region10: #{tpu_custom_call.1} parent=1 // pred_check
      _
    $region11: #{tpu_custom_call.1} parent=1 // pred_check_branch
      %20 = sbr.rel (0) target = $region13
    $region12: #{tpu_custom_call.1} parent=1 // pred_region
      _
    $region13: #{tpu_custom_call.1} parent=1 // pred_fallthru
      _
    // Predicated region
    $region14: #{tpu_custom_call.1} parent=1 // pred_check
      _
    $region15: #{tpu_custom_call.1} parent=1 // pred_check_branch
      %22 = sbr.rel (0) target = $region17
    $region16: #{tpu_custom_call.1} parent=1 // pred_region
      _
    $region17: #{tpu_custom_call.1} parent=1 // pred_fallthru
      _
    // Predicated region
    $region18: #{tpu_custom_call.1} parent=1 // pred_check
      _
    $region19: #{tpu_custom_call.1} parent=1 // pred_check_branch
      %24 = sbr.rel (0) target = $region21
    $region20: #{tpu_custom_call.1} parent=1 // pred_region
      _
    $region21: #{tpu_custom_call.1} parent=1 // pred_fallthru
      _
    %v25 = vld [vmem:[%s0] sm:$0xff]
    %v26 = vld [vmem:[%s0 + $0x8] sm:$0xff]
    %v27 = vld [vmem:[%s1] sm:$0xff]
    %v28 = vld [vmem:[%s1 + $0x8] sm:$0xff]
    %v29 = vld [vmem:[%s1 + $0x10] sm:$0xff]
    %v30 = vld [vmem:[%s1 + $0x18] sm:$0xff]
    %v31 = vld [vmem:[%s2] sm:$0x1]
    %v33 = vperm.slane %v31, 0
    %vm35 = vcmask 261120
    %v37 = vsel %vm35, %v25, 0
    %v40 = vsel %vm35, %v26, 0
    %42 = vmatpush.msra.mxu0 0.0
    %43 = vmatpush.msra.mxu0 0.0
    %44 = vmatpush.msra.mxu0 0.0
    %45 = vmatpush.msra.mxu0 0.0
    %46 = vmatpush.msra.mxu0 0.0
    %47 = vmatpush.msra.mxu0 0.0
    %48 = vmatpush.msra.mxu0 0.0
    %49 = vmatpush.msra.mxu0 0.0
    %50 = vmatpush.msra.mxu0 0.0
    %51 = vmatpush.msra.mxu0 0.0
    %52 = vmatpush.msra.mxu0 0.0
    %53 = vmatpush.msra.mxu0 0.0
    %54 = vmatpush.msra.mxu0 %v30
    %55 = vmatpush.msra.mxu0 %v29
    %56 = vmatpush.msra.mxu0 %v28
    %57 = vmatpush.msra.mxu0 %v27
    %58 = vmatmul.f32.gmra.mxu0 %v37
    %v59 = vpop.f32.mrf.mxu0
    %v60 = vadd.f32 %v33, %v59
    %61 = vmatmul.f32.gmra.mxu0 %v40
    %v62 = vpop.f32.mrf.mxu0
    %v63 = vadd.f32 %v33, %v62
    %64 = vdwg.mxu0
    %vm65 = vcmp.gt.f32.partialorder %v60, 0.0
    %vm66 = vcmp.gt.f32.partialorder %v63, 0.0
    %v67 = vsel %vm65, 1, 0
    %v68 = vsel %vm66, 1, 0
    %v69 = vcvt.s32.f32 %v67
    %v70 = vcvt.s32.f32 %v68
    %vm71 = vcmask 523264
    %72 = vst.msk [vmem:[#allocation2] sm:$0xff] %vm71, %v69
    %73 = vst.msk [vmem:[#allocation2 + $0x8] sm:$0xff] %vm71, %v70
    %v74 = vld [vmem:[%s3] sm:$0xff]
    %v75 = vld [vmem:[%s3 + $0x8] sm:$0xff]
    %v76 = vld [vmem:[%s3 + $0x10] sm:$0xff]
    %v77 = vld [vmem:[%s3 + $0x18] sm:$0xff]
    %v78 = vld [vmem:[%s3 + $0x20] sm:$0xff]
    %v79 = vld [vmem:[%s3 + $0x28] sm:$0xff]
    %v80 = vld [vmem:[%s3 + $0x30] sm:$0xff]
    %v81 = vld [vmem:[%s3 + $0x38] sm:$0xff]
    %v82 = vld [vmem:[%s4] sm:$0x1]
    %v84 = vperm.slane %v82, 0
    %v87 = vsel %vm71, %v69, 0
    %v90 = vsel %vm71, %v70, 0
    %92 = vmatpush.msra.mxu0 0.0
    %93 = vmatpush.msra.mxu0 0.0
    %94 = vmatpush.msra.mxu0 0.0
    %95 = vmatpush.msra.mxu0 0.0
    %96 = vmatpush.msra.mxu0 0.0
    %97 = vmatpush.msra.mxu0 0.0
    %98 = vmatpush.msra.mxu0 0.0
    %99 = vmatpush.msra.mxu0 0.0
    %100 = vmatpush.msra.mxu0 %v81
    %101 = vmatpush.msra.mxu0 %v80
    %102 = vmatpush.msra.mxu0 %v79
    %103 = vmatpush.msra.mxu0 %v78
    %104 = vmatpush.msra.mxu0 %v77
    %105 = vmatpush.msra.mxu0 %v76
    %106 = vmatpush.msra.mxu0 %v75
    %107 = vmatpush.msra.mxu0 %v74
    %108 = vmatmul.f32.gmra.mxu0 %v87
    %v109 = vpop.f32.mrf.mxu0
    %v110 = vadd.f32 %v84, %v109
    %111 = vmatmul.f32.gmra.mxu0 %v90
    %v112 = vpop.f32.mrf.mxu0
    %v113 = vadd.f32 %v84, %v112
    %114 = vdwg.mxu0
    %vm115 = vcmp.gt.f32.partialorder %v110, 0.0
    %vm116 = vcmp.gt.f32.partialorder %v113, 0.0
    %v117 = vsel %vm115, 1, 0
    %v118 = vsel %vm116, 1, 0
    %v119 = vcvt.s32.f32 %v117
    %v120 = vcvt.s32.f32 %v118
    %vm121 = vcmask 130048
    %122 = vst.msk [vmem:[#allocation4] sm:$0xff] %vm121, %v119
    %123 = vst.msk [vmem:[#allocation4 + $0x8] sm:$0xff] %vm121, %v120
    %126 = vrot.lane.b32.xlu0 %v60, 64
    %v127 = vpop.permute.xlu0 %126
    %128 = vrot.lane.b32.xlu0 %v63, 64
    %v129 = vpop.permute.xlu0 %128
    %v132 = vadd.f32 %v110, %v127
    %v133 = vadd.f32 %v113, %v129
    %vm134 = vcmp.gt.f32.partialorder %v132, 0.0
    %vm135 = vcmp.gt.f32.partialorder %v133, 0.0
    %v136 = vsel %vm134, 1, 0
    %v137 = vsel %vm135, 1, 0
    %v138 = vcvt.s32.f32 %v136
    %v139 = vcvt.s32.f32 %v137
    %140 = vst.msk [vmem:[#allocation6] sm:$0xff] %vm121, %v138
    %141 = vst.msk [vmem:[#allocation6 + $0x8] sm:$0xff] %vm121, %v139
    // Predicated region
    $region22: #{tpu_custom_call.1} parent=1 // pred_check
      _
    $region23: #{tpu_custom_call.1} parent=1 // pred_check_branch
      %143 = sbr.rel (0) target = $region25
    $region24: #{tpu_custom_call.1} parent=1 // pred_region
      %145 = vsyncadd [#allocation3], 0
      %s146 = sshll.u32 [#allocation2], 4
      %s147 = int_to_ptr.vmem [resolvable:$true] %s146
      %s148 = sshll.u32 %s5, 4
      %s149 = int_to_ptr.hbm [resolvable:$true] %s148
      %154 = dma.vmem_to_hbm [thread:$0]  %s147, 256, %s149, [#allocation3], 128, 128, 8
    $region25: #{tpu_custom_call.1} parent=1 // pred_fallthru
      _
    // Predicated region
    $region26: #{tpu_custom_call.1} parent=1 // pred_check
      _
    $region27: #{tpu_custom_call.1} parent=1 // pred_check_branch
      %156 = sbr.rel (0) target = $region29
    $region28: #{tpu_custom_call.1} parent=1 // pred_region
      %158 = vsyncadd [#allocation5], 0
      %s159 = sshll.u32 [#allocation4], 4
      %s160 = int_to_ptr.vmem [resolvable:$true] %s159
      %s161 = sshll.u32 %s6, 4
      %s162 = int_to_ptr.hbm [resolvable:$true] %s161
      %167 = dma.vmem_to_hbm [thread:$0]  %s160, 256, %s162, [#allocation5], 128, 128, 8
    $region29: #{tpu_custom_call.1} parent=1 // pred_fallthru
      _
    // Predicated region
    $region30: #{tpu_custom_call.1} parent=1 // pred_check
      _
    $region31: #{tpu_custom_call.1} parent=1 // pred_check_branch
      %169 = sbr.rel (0) target = $region33
    $region32: #{tpu_custom_call.1} parent=1 // pred_region
      %171 = vsyncadd [#allocation5], 0
      %s172 = sshll.u32 [#allocation6], 4
      %s173 = int_to_ptr.vmem [resolvable:$true] %s172
      %s174 = sshll.u32 %s7, 4
      %s175 = int_to_ptr.hbm [resolvable:$true] %s174
      %180 = dma.vmem_to_hbm [thread:$0]  %s173, 256, %s175, [#allocation5], 128, 128, 8
    $region33: #{tpu_custom_call.1} parent=1 // pred_fallthru
      _
    // Predicated region
    $region34: #{tpu_custom_call.1} parent=1 // pred_check
      _
    $region35: #{tpu_custom_call.1} parent=1 // pred_check_branch
      %182 = sbr.rel (0) target = $region37
    $region36: #{tpu_custom_call.1} parent=1 // pred_region
      %184 = dma.done [#allocation3], 256
    $region37: #{tpu_custom_call.1} parent=1 // pred_fallthru
      _
    // Predicated region
    $region38: #{tpu_custom_call.1} parent=1 // pred_check
      _
    $region39: #{tpu_custom_call.1} parent=1 // pred_check_branch
      %186 = sbr.rel (0) target = $region41
    $region40: #{tpu_custom_call.1} parent=1 // pred_region
      %188 = dma.done [#allocation5], 256
    $region41: #{tpu_custom_call.1} parent=1 // pred_fallthru
      _
    // Predicated region
    $region42: #{tpu_custom_call.1} parent=1 // pred_check
      _
    $region43: #{tpu_custom_call.1} parent=1 // pred_check_branch
      %190 = sbr.rel (0) target = $region45
    $region44: #{tpu_custom_call.1} parent=1 // pred_region
      %192 = dma.done [#allocation5], 256
    $region45: #{tpu_custom_call.1} parent=1 // pred_fallthru
      _
    %193 = vsyncpa [#allocation3], 1
    %194 = vsyncpa [#allocation5], 1

</llo_original>
